<compile_context>
chip_gen: v5e
topology: v5e:2x2
jax: 0.10.0
libtpu: 0.0.40
codegen_flags: <defaults>
</compile_context>

<pallas_src>
import jax
import jax.numpy as jnp
from jax.experimental import pallas as pl
from jax.experimental.pallas import tpu as pltpu

F32 = jnp.float32
BF16 = jnp.bfloat16
H = 64          # hidden width of the forward / inverse models
MAX_TB = 1024   # batch-tile cap: comfortably inside VMEM on v5e/v6e/v7x


def _round_up(x, m):
    return ((x + m - 1) // m) * m


# --------------------------- kernel (factory) --------------------------------

def build_icm_kernel(tb, feature_dim, action_dim, b_total, need_mask,
                     w_layout, b_layout):
    """Fused ICM forward for one batch tile of `tb` rows.

    w_layout[name] = (row_start, rows, cols) static offsets into the bf16 weight slab.
    b_layout[name] = (row, cols) static offsets into the f32 bias slab.
    """
    F, A = feature_dim, action_dim

    def kernel(st_ref, ns_ref, act_ref, fe_w1_ref, w_slab_ref, b_slab_ref,
               loss_ref):
        def w(name):
            r0, rows, cols = w_layout[name]
            return w_slab_ref[r0:r0 + rows, 0:cols]          # bf16 slice

        def b(name):
            row, cols = b_layout[name]
            return b_slab_ref[row:row + 1, 0:cols]           # (1, cols) f32

        def dot(x, ww):                                       # bf16 MXU, f32 acc
            return jnp.dot(x.astype(BF16), ww, preferred_element_type=F32)

        def relu(x):
            return jnp.maximum(x, 0.0)

        act = act_ref[...]                                    # (tb, A) f32

        # ---- Feature extractor: state & next_state stacked along M ---------
        xs = jnp.concatenate([st_ref[...], ns_ref[...]], axis=0)   # (2tb, S)
        h = relu(dot(xs, fe_w1_ref[...]) + b("fe1"))               # (2tb, 256)
        h = relu(dot(h, w("fe2")) + b("fe2"))                      # (2tb, 64)
        feats = dot(h, w("fe3")) + b("fe3")                        # (2tb, F)
        sf = feats[0:tb, :]
        nsf = feats[tb:2 * tb, :]

        # ---- Forward + inverse models, lane-packed (FM lanes 0:64, IM 64:128)
        z1 = (dot(sf, w("w1s")) + dot(act, w("w1a"))
              + dot(nsf, w("w1n")) + b("b1"))                      # (tb, 128)
        h1 = relu(z1)
        h2 = relu(dot(h1, w("w2")) + b("b2"))                      # (tb, 128)
        h3 = relu(dot(h2, w("w3")) + b("b3"))                      # (tb, 128)
        out4 = dot(h3, w("w4")) + b("b4")                          # (tb, 128)

        pred_nsf = out4[:, 0:F]           # forward-model prediction
        pred_act = out4[:, H:H + A]       # inverse-model prediction

        # ---- Per-tile partial sums of squared errors ------------------------
        d_f = pred_nsf - nsf
        d_i = pred_act - act
        if need_mask:  # mask padded batch rows (bias-driven errors must not leak in)
            rows = (jax.lax.broadcasted_iota(jnp.int32, (tb, 1), 0)
                    + pl.program_id(0) * tb)
            valid = (rows < b_total).astype(F32)
            d_f = d_f * valid
            d_i = d_i * valid

        f_sum = jnp.sum(jnp.sum(d_f * d_f, axis=1, keepdims=True),
                        axis=0, keepdims=True)                     # (1, 1)
        i_sum = jnp.sum(jnp.sum(d_i * d_i, axis=1, keepdims=True),
                        axis=0, keepdims=True)                     # (1, 1)

        # lane 0 = forward sum-sq, lane 1 = inverse sum-sq (per-tile output)
        lane = jax.lax.broadcasted_iota(jnp.int32, loss_ref.shape, 1)
        loss_ref[...] = (jnp.where(lane == 0, f_sum, 0.0)
                         + jnp.where(lane == 1, i_sum, 0.0))

    return kernel


# ------------------------------ wrapper ---------------------------------------

def icm_forward(packed, state, action, next_state, eta=0.05):
    fe_w1 = packed["fe_w1"]
    w_slab = packed["w_slab"]
    b_slab = packed["b_slab"]
    F = packed["feature_dim"]
    A = packed["action_dim"]

    B, S = state.shape
    assert action.shape == (B, A)
    assert next_state.shape == (B, S)

    # batch tiling: minimal-padding tiles, 8-aligned, capped at MAX_TB
    nt = -(-B // MAX_TB)
    tb = _round_up(-(-B // nt), 8)
    nt = -(-B // tb)
    b_pad = nt * tb
    need_mask = b_pad != B
    if need_mask:
        pad = ((0, b_pad - B), (0, 0))
        state = jnp.pad(state, pad)
        next_state = jnp.pad(next_state, pad)
        action = jnp.pad(action, pad)

    kernel = build_icm_kernel(tb, F, A, B, need_mask,
                              packed["w_layout"], packed["b_layout"])

    loss_out = pl.pallas_call(
        kernel,
        grid=(nt,),
        in_specs=[
            pl.BlockSpec((tb, S), lambda i: (i, 0)),          # state tile
            pl.BlockSpec((tb, S), lambda i: (i, 0)),          # next_state tile
            pl.BlockSpec((tb, A), lambda i: (i, 0)),          # action tile
            pl.BlockSpec(fe_w1.shape, lambda i: (0, 0)),      # resident weights
            pl.BlockSpec(w_slab.shape, lambda i: (0, 0)),
            pl.BlockSpec(b_slab.shape, lambda i: (0, 0)),
        ],
        out_specs=pl.BlockSpec((8, 128), lambda i: (i, 0)),   # per-tile partials
        out_shape=jax.ShapeDtypeStruct((nt * 8, 128), F32),
        compiler_params=pltpu.CompilerParams(
            dimension_semantics=("parallel",)),               # no cross-tile dep
    )(state, next_state, action, fe_w1, w_slab, b_slab)

    # finalize the means outside the kernel (independent of batch tiling)
    partial = loss_out.reshape(nt, 8, 128)[:, 0, :]           # (nt, 128)
    fwd_loss = jnp.sum(partial[:, 0]) / (B * F)
    inv_loss = jnp.sum(partial[:, 1]) / (B * A)
    intrinsic_reward = eta * jax.lax.stop_gradient(fwd_loss)  # == .detach()
    return fwd_loss, inv_loss, intrinsic_reward


# ----------------------- parameter construction / packing ---------------------

def init_linear(key, in_dim, out_dim):
    """PyTorch nn.Linear default init: U(-1/sqrt(fan_in), 1/sqrt(fan_in))."""
    kw, kb = jax.random.split(key)
    bound = 1.0 / (in_dim ** 0.5)
    w = jax.random.uniform(kw, (in_dim, out_dim), F32, -bound, bound)
    b = jax.random.uniform(kb, (out_dim,), F32, -bound, bound)
    return w, b


def make_icm_params(key, state_dim, action_dim, feature_dim):
    ks = jax.random.split(key, 11)
    p = {}
    p["fe1"] = init_linear(ks[0], state_dim, 256)
    p["fe2"] = init_linear(ks[1], 256, 64)
    p["fe3"] = init_linear(ks[2], 64, feature_dim)
    p["fm1"] = init_linear(ks[3], feature_dim + action_dim, 64)
    p["fm2"] = init_linear(ks[4], 64, 64)
    p["fm3"] = init_linear(ks[5], 64, 64)
    p["fm4"] = init_linear(ks[6], 64, feature_dim)
    p["im1"] = init_linear(ks[7], 2 * feature_dim, 64)
    p["im2"] = init_linear(ks[8], 64, 64)
    p["im3"] = init_linear(ks[9], 64, 16)
    p["im4"] = init_linear(ks[10], 16, action_dim)
    return p


def pack_icm_params(p, state_dim, action_dim, feature_dim):
    """Pack the 24 small arrays into 3 DMA-friendly buffers + static layouts.

    FM/IM layers are lane-packed: FM occupies lanes 0:64, IM lanes 64:128.
    Weight slabs are stored in bf16; biases stay f32.
    """
    F, A = feature_dim, action_dim
    assert F <= H and A <= H, "lane packing assumes feature/action dims <= 64"

    fm1_w = p["fm1"][0]        # (F+A, 64)
    im1_w = p["im1"][0]        # (2F, 64)

    # layer 1: both models consume sf -> packed side by side; the action / nsf
    # parts only feed their own model's lane half.
    w1s = jnp.concatenate([fm1_w[:F, :], im1_w[:F, :]], axis=1)            # (F,128)
    w1a = jnp.concatenate([fm1_w[F:F + A, :], jnp.zeros((A, H), F32)], axis=1)
    w1n = jnp.concatenate([jnp.zeros((F, H), F32), im1_w[F:2 * F, :]], axis=1)

    # hidden layers 2/3/4: block-diagonal -> one 128-lane matmul per layer
    w2 = (jnp.zeros((2 * H, 2 * H), F32)
          .at[0:H, 0:H].set(p["fm2"][0]).at[H:, H:].set(p["im2"][0]))
    w3 = (jnp.zeros((2 * H, 2 * H), F32)
          .at[0:H, 0:H].set(p["fm3"][0]).at[H:, H:H + 16].set(p["im3"][0]))
    w4 = (jnp.zeros((2 * H, 2 * H), F32)
          .at[0:H, 0:F].set(p["fm4"][0]).at[H:H + 16, H:H + A].set(p["im4"][0]))

    slab_cols = 2 * H  # 128
    segs = [
        ("fe2", p["fe2"][0]), ("fe3", p["fe3"][0]),
        ("w1s", w1s), ("w1a", w1a), ("w1n", w1n),
        ("w2", w2), ("w3", w3), ("w4", w4),
    ]
    w_layout = {}
    blocks = []
    row = 0
    for name, wmat in segs:
        r, c = wmat.shape
        r_pad = _round_up(r, 16)     # bf16 sublane packing: keep starts 16-aligned
        blocks.append(jnp.zeros((r_pad, slab_cols), F32).at[:r, :c].set(wmat))
        w_layout[name] = (row, r, c)
        row += r_pad
    w_slab = jnp.concatenate(blocks, axis=0).astype(BF16)

    # packed biases (kept f32: elementwise math stays f32, v5e-safe)
    def pad_to(v, n):
        return jnp.zeros((n,), F32).at[:v.shape[0]].set(v)

    b1 = jnp.concatenate([p["fm1"][1], p["im1"][1]])                  # (128,)
    b2 = jnp.concatenate([p["fm2"][1], p["im2"][1]])                  # (128,)
    b3 = jnp.concatenate([p["fm3"][1], pad_to(p["im3"][1], H)])       # (128,)
    b4 = jnp.concatenate([pad_to(p["fm4"][1], H), pad_to(p["im4"][1], H)])

    bias_cols = 256  # widest bias (fe1)
    b_order = [("fe1", p["fe1"][1]), ("fe2", p["fe2"][1]), ("fe3", p["fe3"][1]),
               ("b1", b1), ("b2", b2), ("b3", b3), ("b4", b4)]
    b_layout = {}
    b_rows = []
    for i, (name, bv) in enumerate(b_order):
        b_rows.append(jnp.zeros((1, bias_cols), F32).at[0, :bv.shape[0]].set(bv))
        b_layout[name] = (i, bv.shape[0])
    b_slab = jnp.concatenate(b_rows, axis=0)

    return {
        "fe_w1": p["fe1"][0].astype(BF16),
        "w_slab": w_slab,
        "b_slab": b_slab,
        "w_layout": w_layout,
        "b_layout": b_layout,
        "feature_dim": F,
        "action_dim": A,
        "state_dim": state_dim,
    }


# ------------------------------ pure-JAX references ----------------------------

def _icm_reference(p, state, action, next_state, eta, matmul_bf16):
    def lin(x, wb):
        w, bb = wb
        if matmul_bf16:
            return jnp.dot(x.astype(BF16), w.astype(BF16),
                           preferred_element_type=F32) + bb
        return x @ w + bb

    def feat(x):
        h = jax.nn.relu(lin(x, p["fe1"]))
        h = jax.nn.relu(lin(h, p["fe2"]))
        return lin(h, p["fe3"])

    sf, nsf = feat(state), feat(next_state)
    h = jax.nn.relu(lin(jnp.concatenate([sf, action], axis=1), p["fm1"]))
    h = jax.nn.relu(lin(h, p["fm2"]))
    h = jax.nn.relu(lin(h, p["fm3"]))
    pred_nsf = lin(h, p["fm4"])
    h = jax.nn.relu(lin(jnp.concatenate([sf, nsf], axis=1), p["im1"]))
    h = jax.nn.relu(lin(h, p["im2"]))
    h = jax.nn.relu(lin(h, p["im3"]))
    pred_act = lin(h, p["im4"])
    fl = jnp.mean((pred_nsf - nsf) ** 2)
    il = jnp.mean((pred_act - action) ** 2)
    return fl, il, eta * jax.lax.stop_gradient(fl)


def icm_reference_bf16(p, state, action, next_state, eta=0.05):
    return _icm_reference(p, state, action, next_state, eta, matmul_bf16=True)


def icm_reference_f32(p, state, action, next_state, eta=0.05):
    return _icm_reference(p, state, action, next_state, eta, matmul_bf16=False)


if __name__ == "__main__":
    # Small, module-consistent shapes: env obs dim 16, action dim 4, feature dim 8.
    batch, state_dim, action_dim, feature_dim = 8, 16, 4, 8
    eta = 0.05

    key = jax.random.PRNGKey(0)
    kp, ks, ka, kn = jax.random.split(key, 4)
    raw_params = make_icm_params(kp, state_dim, action_dim, feature_dim)
    packed = pack_icm_params(raw_params, state_dim, action_dim, feature_dim)

    state = jax.random.normal(ks, (batch, state_dim), F32)
    action = jax.random.normal(ka, (batch, action_dim), F32)
    next_state = jax.random.normal(kn, (batch, state_dim), F32)

    fwd_loss, inv_loss, intrinsic_reward = icm_forward(
        packed, state, action, next_state, eta)
    jax.block_until_ready((fwd_loss, inv_loss, intrinsic_reward))

    # tight check vs a reference that mirrors the kernel's bf16-matmul numerics
    mf, mi, mr = icm_reference_bf16(raw_params, state, action, next_state, eta)
    assert jnp.allclose(fwd_loss, mf, rtol=2e-3, atol=1e-5), (fwd_loss, mf)
    assert jnp.allclose(inv_loss, mi, rtol=2e-3, atol=1e-5), (inv_loss, mi)
    assert jnp.allclose(intrinsic_reward, mr, rtol=2e-3, atol=1e-5), (intrinsic_reward, mr)

    # loose check vs the full-f32 reference (documents bf16 matmul drift)
    rf, ri, rr = icm_reference_f32(raw_params, state, action, next_state, eta)
    assert jnp.allclose(fwd_loss, rf, rtol=8e-2, atol=2e-3), (fwd_loss, rf)
    assert jnp.allclose(inv_loss, ri, rtol=8e-2, atol=2e-3), (inv_loss, ri)

    print("KERNEL_OK")
</pallas_src>

<mosaic_0001>
module attributes {stable_mosaic.version = 11 : i64} {
  func.func @kernel(%arg0: i32, %arg1: memref<8x16xf32, #tpu.memory_space<vmem>>, %arg2: memref<8x16xf32, #tpu.memory_space<vmem>>, %arg3: memref<8x4xf32, #tpu.memory_space<vmem>>, %arg4: memref<16x256xbf16, #tpu.memory_space<vmem>>, %arg5: memref<752x128xbf16, #tpu.memory_space<vmem>>, %arg6: memref<7x256xf32, #tpu.memory_space<vmem>>, %arg7: memref<8x128xf32, #tpu.memory_space<vmem>>) attributes {dimension_semantics = [#tpu.dimension_semantics<parallel>], iteration_bounds = array<i64: 1>, scalar_prefetch = 0 : i64, scratch_operands = 0 : i64, tpu.core_type = #tpu.core_type<tc>, window_params = [{transform_indices = @transform_0, window_bounds = array<i64: 8, 16>}, {transform_indices = @transform_1, window_bounds = array<i64: 8, 16>}, {transform_indices = @transform_2, window_bounds = array<i64: 8, 4>}, {pipeline_mode = #tpu.pipeline_mode<synchronous>, transform_indices = @transform_3, window_bounds = array<i64: 16, 256>}, {pipeline_mode = #tpu.pipeline_mode<synchronous>, transform_indices = @transform_4, window_bounds = array<i64: 752, 128>}, {pipeline_mode = #tpu.pipeline_mode<synchronous>, transform_indices = @transform_5, window_bounds = array<i64: 7, 256>}, {transform_indices = @transform_6, window_bounds = array<i64: 8, 128>}]} {
    %c0 = arith.constant 0 : index
    %c0_0 = arith.constant 0 : index
    %0 = vector.load %arg3[%c0, %c0_0] : memref<8x4xf32, #tpu.memory_space<vmem>>, vector<8x4xf32>
    %c0_1 = arith.constant 0 : index
    %c0_2 = arith.constant 0 : index
    %1 = vector.load %arg1[%c0_1, %c0_2] : memref<8x16xf32, #tpu.memory_space<vmem>>, vector<8x16xf32>
    %c0_3 = arith.constant 0 : index
    %c0_4 = arith.constant 0 : index
    %2 = vector.load %arg2[%c0_3, %c0_4] : memref<8x16xf32, #tpu.memory_space<vmem>>, vector<8x16xf32>
    %3 = tpu.concatenate %1, %2 in 0 : vector<8x16xf32>, vector<8x16xf32> -> vector<16x16xf32>
    %c0_5 = arith.constant 0 : index
    %c0_6 = arith.constant 0 : index
    %4 = vector.load %arg4[%c0_5, %c0_6] : memref<16x256xbf16, #tpu.memory_space<vmem>>, vector<16x256xbf16>
    %5 = arith.truncf %3 : vector<16x16xf32> to vector<16x16xbf16>
    %cst = arith.constant dense<0.000000e+00> : vector<16x256xf32>
    %6 = tpu.matmul %5, %4, %cst {dimension_numbers = #tpu.dot_dimension_numbers<[1], [0], [0], [1], [0, 0, 1, 1], [], []>} : vector<16x16xbf16>, vector<16x256xbf16>, vector<16x256xf32> -> vector<16x256xf32>
    %c0_7 = arith.constant 0 : index
    %c0_8 = arith.constant 0 : index
    %7 = vector.load %arg6[%c0_7, %c0_8] : memref<7x256xf32, #tpu.memory_space<vmem>>, vector<1x256xf32>
    %8 = vector.broadcast %7 : vector<1x256xf32> to vector<16x256xf32>
    %9 = arith.addf %6, %8 : vector<16x256xf32>
    %cst_9 = arith.constant 0.000000e+00 : f32
    %10 = vector.broadcast %cst_9 : f32 to vector<16x256xf32>
    %11 = arith.maximumf %9, %10 : vector<16x256xf32>
    %c0_10 = arith.constant 0 : index
    %c0_11 = arith.constant 0 : index
    %12 = vector.load %arg5[%c0_10, %c0_11] : memref<752x128xbf16, #tpu.memory_space<vmem>>, vector<256x64xbf16>
    %13 = arith.truncf %11 : vector<16x256xf32> to vector<16x256xbf16>
    %cst_12 = arith.constant dense<0.000000e+00> : vector<16x64xf32>
    %14 = tpu.matmul %13, %12, %cst_12 {dimension_numbers = #tpu.dot_dimension_numbers<[1], [0], [0], [1], [0, 0, 1, 1], [], []>} : vector<16x256xbf16>, vector<256x64xbf16>, vector<16x64xf32> -> vector<16x64xf32>
    %c1 = arith.constant 1 : index
    %c0_13 = arith.constant 0 : index
    %15 = vector.load %arg6[%c1, %c0_13] : memref<7x256xf32, #tpu.memory_space<vmem>>, vector<1x64xf32>
    %16 = vector.broadcast %15 : vector<1x64xf32> to vector<16x64xf32>
    %17 = arith.addf %14, %16 : vector<16x64xf32>
    %cst_14 = arith.constant 0.000000e+00 : f32
    %18 = vector.broadcast %cst_14 : f32 to vector<16x64xf32>
    %19 = arith.maximumf %17, %18 : vector<16x64xf32>
    %c256 = arith.constant 256 : index
    %c0_15 = arith.constant 0 : index
    %20 = vector.load %arg5[%c256, %c0_15] : memref<752x128xbf16, #tpu.memory_space<vmem>>, vector<64x8xbf16>
    %21 = arith.truncf %19 : vector<16x64xf32> to vector<16x64xbf16>
    %cst_16 = arith.constant dense<0.000000e+00> : vector<16x8xf32>
    %22 = tpu.matmul %21, %20, %cst_16 {dimension_numbers = #tpu.dot_dimension_numbers<[1], [0], [0], [1], [0, 0, 1, 1], [], []>} : vector<16x64xbf16>, vector<64x8xbf16>, vector<16x8xf32> -> vector<16x8xf32>
    %c2 = arith.constant 2 : index
    %c0_17 = arith.constant 0 : index
    %23 = vector.load %arg6[%c2, %c0_17] : memref<7x256xf32, #tpu.memory_space<vmem>>, vector<1x8xf32>
    %24 = vector.broadcast %23 : vector<1x8xf32> to vector<16x8xf32>
    %25 = arith.addf %22, %24 : vector<16x8xf32>
    %26 = vector.extract_strided_slice %25 {offsets = [0, 0], sizes = [8, 8], strides = [1, 1]} : vector<16x8xf32> to vector<8x8xf32>
    %27 = vector.extract_strided_slice %25 {offsets = [8, 0], sizes = [8, 8], strides = [1, 1]} : vector<16x8xf32> to vector<8x8xf32>
    %c320 = arith.constant 320 : index
    %c0_18 = arith.constant 0 : index
    %28 = vector.load %arg5[%c320, %c0_18] : memref<752x128xbf16, #tpu.memory_space<vmem>>, vector<8x128xbf16>
    %29 = arith.truncf %26 : vector<8x8xf32> to vector<8x8xbf16>
    %cst_19 = arith.constant dense<0.000000e+00> : vector<8x128xf32>
    %30 = tpu.matmul %29, %28, %cst_19 {dimension_numbers = #tpu.dot_dimension_numbers<[1], [0], [0], [1], [0, 0, 1, 1], [], []>} : vector<8x8xbf16>, vector<8x128xbf16>, vector<8x128xf32> -> vector<8x128xf32>
    %c336 = arith.constant 336 : index
    %c0_20 = arith.constant 0 : index
    %31 = vector.load %arg5[%c336, %c0_20] : memref<752x128xbf16, #tpu.memory_space<vmem>>, vector<4x128xbf16>
    %32 = arith.truncf %0 : vector<8x4xf32> to vector<8x4xbf16>
    %cst_21 = arith.constant dense<0.000000e+00> : vector<8x128xf32>
    %33 = tpu.matmul %32, %31, %cst_21 {dimension_numbers = #tpu.dot_dimension_numbers<[1], [0], [0], [1], [0, 0, 1, 1], [], []>} : vector<8x4xbf16>, vector<4x128xbf16>, vector<8x128xf32> -> vector<8x128xf32>
    %34 = arith.addf %30, %33 : vector<8x128xf32>
    %c352 = arith.constant 352 : index
    %c0_22 = arith.constant 0 : index
    %35 = vector.load %arg5[%c352, %c0_22] : memref<752x128xbf16, #tpu.memory_space<vmem>>, vector<8x128xbf16>
    %36 = arith.truncf %27 : vector<8x8xf32> to vector<8x8xbf16>
    %cst_23 = arith.constant dense<0.000000e+00> : vector<8x128xf32>
    %37 = tpu.matmul %36, %35, %cst_23 {dimension_numbers = #tpu.dot_dimension_numbers<[1], [0], [0], [1], [0, 0, 1, 1], [], []>} : vector<8x8xbf16>, vector<8x128xbf16>, vector<8x128xf32> -> vector<8x128xf32>
    %38 = arith.addf %34, %37 : vector<8x128xf32>
    %c3 = arith.constant 3 : index
    %c0_24 = arith.constant 0 : index
    %39 = vector.load %arg6[%c3, %c0_24] : memref<7x256xf32, #tpu.memory_space<vmem>>, vector<1x128xf32>
    %40 = vector.broadcast %39 : vector<1x128xf32> to vector<8x128xf32>
    %41 = arith.addf %38, %40 : vector<8x128xf32>
    %cst_25 = arith.constant 0.000000e+00 : f32
    %42 = vector.broadcast %cst_25 : f32 to vector<8x128xf32>
    %43 = arith.maximumf %41, %42 : vector<8x128xf32>
    %c368 = arith.constant 368 : index
    %c0_26 = arith.constant 0 : index
    %44 = vector.load %arg5[%c368, %c0_26] : memref<752x128xbf16, #tpu.memory_space<vmem>>, vector<128x128xbf16>
    %45 = arith.truncf %43 : vector<8x128xf32> to vector<8x128xbf16>
    %cst_27 = arith.constant dense<0.000000e+00> : vector<8x128xf32>
    %46 = tpu.matmul %45, %44, %cst_27 {dimension_numbers = #tpu.dot_dimension_numbers<[1], [0], [0], [1], [0, 0, 1, 1], [], []>} : vector<8x128xbf16>, vector<128x128xbf16>, vector<8x128xf32> -> vector<8x128xf32>
    %c4 = arith.constant 4 : index
    %c0_28 = arith.constant 0 : index
    %47 = vector.load %arg6[%c4, %c0_28] : memref<7x256xf32, #tpu.memory_space<vmem>>, vector<1x128xf32>
    %48 = vector.broadcast %47 : vector<1x128xf32> to vector<8x128xf32>
    %49 = arith.addf %46, %48 : vector<8x128xf32>
    %cst_29 = arith.constant 0.000000e+00 : f32
    %50 = vector.broadcast %cst_29 : f32 to vector<8x128xf32>
    %51 = arith.maximumf %49, %50 : vector<8x128xf32>
    %c496 = arith.constant 496 : index
    %c0_30 = arith.constant 0 : index
    %52 = vector.load %arg5[%c496, %c0_30] : memref<752x128xbf16, #tpu.memory_space<vmem>>, vector<128x128xbf16>
    %53 = arith.truncf %51 : vector<8x128xf32> to vector<8x128xbf16>
    %cst_31 = arith.constant dense<0.000000e+00> : vector<8x128xf32>
    %54 = tpu.matmul %53, %52, %cst_31 {dimension_numbers = #tpu.dot_dimension_numbers<[1], [0], [0], [1], [0, 0, 1, 1], [], []>} : vector<8x128xbf16>, vector<128x128xbf16>, vector<8x128xf32> -> vector<8x128xf32>
    %c5 = arith.constant 5 : index
    %c0_32 = arith.constant 0 : index
    %55 = vector.load %arg6[%c5, %c0_32] : memref<7x256xf32, #tpu.memory_space<vmem>>, vector<1x128xf32>
    %56 = vector.broadcast %55 : vector<1x128xf32> to vector<8x128xf32>
    %57 = arith.addf %54, %56 : vector<8x128xf32>
    %cst_33 = arith.constant 0.000000e+00 : f32
    %58 = vector.broadcast %cst_33 : f32 to vector<8x128xf32>
    %59 = arith.maximumf %57, %58 : vector<8x128xf32>
    %c624 = arith.constant 624 : index
    %c0_34 = arith.constant 0 : index
    %60 = vector.load %arg5[%c624, %c0_34] : memref<752x128xbf16, #tpu.memory_space<vmem>>, vector<128x128xbf16>
    %61 = arith.truncf %59 : vector<8x128xf32> to vector<8x128xbf16>
    %cst_35 = arith.constant dense<0.000000e+00> : vector<8x128xf32>
    %62 = tpu.matmul %61, %60, %cst_35 {dimension_numbers = #tpu.dot_dimension_numbers<[1], [0], [0], [1], [0, 0, 1, 1], [], []>} : vector<8x128xbf16>, vector<128x128xbf16>, vector<8x128xf32> -> vector<8x128xf32>
    %c6 = arith.constant 6 : index
    %c0_36 = arith.constant 0 : index
    %63 = vector.load %arg6[%c6, %c0_36] : memref<7x256xf32, #tpu.memory_space<vmem>>, vector<1x128xf32>
    %64 = vector.broadcast %63 : vector<1x128xf32> to vector<8x128xf32>
    %65 = arith.addf %62, %64 : vector<8x128xf32>
    %66 = vector.extract_strided_slice %65 {offsets = [0, 0], sizes = [8, 8], strides = [1, 1]} : vector<8x128xf32> to vector<8x8xf32>
    %67 = vector.extract_strided_slice %65 {offsets = [0, 64], sizes = [8, 4], strides = [1, 1]} : vector<8x128xf32> to vector<8x4xf32>
    %68 = arith.subf %66, %27 : vector<8x8xf32>
    %69 = arith.subf %67, %0 : vector<8x4xf32>
    %70 = arith.mulf %68, %68 : vector<8x8xf32>
    %cst_37 = arith.constant dense<0.000000e+00> : vector<8xf32>
    %71 = vector.multi_reduction <add>, %70, %cst_37 [1] : vector<8x8xf32> to vector<8xf32>
    %72 = vector.shape_cast %71 : vector<8xf32> to vector<8x1xf32>
    %cst_38 = arith.constant dense<0.000000e+00> : vector<1xf32>
    %73 = vector.multi_reduction <add>, %72, %cst_38 [0] : vector<8x1xf32> to vector<1xf32>
    %74 = vector.shape_cast %73 : vector<1xf32> to vector<1x1xf32>
    %75 = arith.mulf %69, %69 : vector<8x4xf32>
    %cst_39 = arith.constant dense<0.000000e+00> : vector<8xf32>
    %76 = vector.multi_reduction <add>, %75, %cst_39 [1] : vector<8x4xf32> to vector<8xf32>
    %77 = vector.shape_cast %76 : vector<8xf32> to vector<8x1xf32>
    %cst_40 = arith.constant dense<0.000000e+00> : vector<1xf32>
    %78 = vector.multi_reduction <add>, %77, %cst_40 [0] : vector<8x1xf32> to vector<1xf32>
    %79 = vector.shape_cast %78 : vector<1xf32> to vector<1x1xf32>
    %80 = tpu.iota {dimensions = array<i32: 1>} : vector<8x128xi32>
    %c0_i32 = arith.constant 0 : i32
    %81 = vector.broadcast %c0_i32 : i32 to vector<8x128xi32>
    %82 = arith.cmpi eq, %80, %81 : vector<8x128xi32>
    %cst_41 = arith.constant 0.000000e+00 : f32
    %83 = vector.shape_cast %74 : vector<1x1xf32> to vector<1x1xf32>
    %84 = vector.broadcast %83 : vector<1x1xf32> to vector<8x128xf32>
    %85 = vector.broadcast %cst_41 : f32 to vector<8x128xf32>
    %86 = arith.select %82, %84, %85 : vector<8x128xi1>, vector<8x128xf32>
    %c1_i32 = arith.constant 1 : i32
    %87 = vector.broadcast %c1_i32 : i32 to vector<8x128xi32>
    %88 = arith.cmpi eq, %80, %87 : vector<8x128xi32>
    %cst_42 = arith.constant 0.000000e+00 : f32
    %89 = vector.shape_cast %79 : vector<1x1xf32> to vector<1x1xf32>
    %90 = vector.broadcast %89 : vector<1x1xf32> to vector<8x128xf32>
    %91 = vector.broadcast %cst_42 : f32 to vector<8x128xf32>
    %92 = arith.select %88, %90, %91 : vector<8x128xi1>, vector<8x128xf32>
    %93 = arith.addf %86, %92 : vector<8x128xf32>
    %c0_43 = arith.constant 0 : index
    %c0_44 = arith.constant 0 : index
    %94 = vector.load %arg7[%c0_43, %c0_44] : memref<8x128xf32, #tpu.memory_space<vmem>>, vector<8x128xf32>
    tpu.vector_store %arg7[%c0_43, %c0_44], %93 {strides = array<i32>} : memref<8x128xf32, #tpu.memory_space<vmem>>, vector<8x128xf32>,
    return
  }
  func.func @transform_0(%arg0: i32) -> (i32, i32) {
    %c0_i32 = arith.constant 0 : i32
    %c0_i32_0 = arith.constant 0 : i32
    return %arg0, %c0_i32 : i32, i32
  }
  func.func @transform_1(%arg0: i32) -> (i32, i32) {
    %c0_i32 = arith.constant 0 : i32
    %c0_i32_0 = arith.constant 0 : i32
    return %arg0, %c0_i32 : i32, i32
  }
  func.func @transform_2(%arg0: i32) -> (i32, i32) {
    %c0_i32 = arith.constant 0 : i32
    %c0_i32_0 = arith.constant 0 : i32
    return %arg0, %c0_i32 : i32, i32
  }
  func.func @transform_3(%arg0: i32) -> (i32, i32) {
    %c0_i32 = arith.constant 0 : i32
    %c0_i32_0 = arith.constant 0 : i32
    %c0_i32_1 = arith.constant 0 : i32
    return %c0_i32, %c0_i32_0 : i32, i32
  }
  func.func @transform_4(%arg0: i32) -> (i32, i32) {
    %c0_i32 = arith.constant 0 : i32
    %c0_i32_0 = arith.constant 0 : i32
    %c0_i32_1 = arith.constant 0 : i32
    return %c0_i32, %c0_i32_0 : i32, i32
  }
  func.func @transform_5(%arg0: i32) -> (i32, i32) {
    %c0_i32 = arith.constant 0 : i32
    %c0_i32_0 = arith.constant 0 : i32
    %c0_i32_1 = arith.constant 0 : i32
    return %c0_i32, %c0_i32_0 : i32, i32
  }
  func.func @transform_6(%arg0: i32) -> (i32, i32) {
    %c0_i32 = arith.constant 0 : i32
    %c0_i32_0 = arith.constant 0 : i32
    return %arg0, %c0_i32 : i32, i32
  }
}

</mosaic_0001>

<llo_original>
// kernel: tpu_custom_call.1
$region0: #{tpu_custom_call.1}
  #allocation0 [shape = 'u32[]', space=smem, size = 0x4, offset = 0x4, fixed_abs, tag = 'smem constant byte address 0x4 - core index']
  #allocation1 [shape = 'u32[72,128]{1,0:T(1,128)}', space=vmem, size = 0x9000, scoped, tag = 'internal scratch']
  %s0 = inlined_call_operand.hbm [shape: f32[8,16], index: 0, kind: input, shape index: {}]
  %s1 = inlined_call_operand.hbm [shape: f32[8,16], index: 1, kind: input, shape index: {}]
  %s2 = inlined_call_operand.vmem [shape: f32[8,4], index: 2, kind: input, shape index: {}]
  %s3 = inlined_call_operand.hbm [shape: bf16[16,256], index: 3, kind: input, shape index: {}]
  %s4 = inlined_call_operand.hbm [shape: bf16[752,128], index: 4, kind: input, shape index: {}]
  %s5 = inlined_call_operand.vmem [shape: f32[7,256], index: 5, kind: input, shape index: {}]
  %s6 = inlined_call_operand.hbm [shape: f32[8,128], index: 6, kind: output, shape index: {}]
  %s7 = sld [smem:[#allocation0]]
  $region50: #{tpu_custom_call.1} parent=0
    _
  %s9 = ssub.s32 1, %s7
  %s10 = scalar_select 0, %s9, %s7
  $region1: #{tpu_custom_call.1} parent=0
    #allocation2 [shape = 'u8[4096]{0}', space=vmem, size = 0x1000, scoped, tag = 'input window, operand 0, single buffered']
    #allocation3 [shape = 's32[1]{0}', space=sflag, size = 0x4, scoped, tag = 'scoped memory for tpu_custom_call.1']
    #allocation4 [shape = 's32[1]{0}', space=sflag, size = 0x4, scoped, tag = 'scoped memory for tpu_custom_call.1']
    #allocation5 [shape = 'u8[4096]{0}', space=vmem, size = 0x1000, scoped, tag = 'input window, operand 1, single buffered']
    #allocation6 [shape = 's32[1]{0}', space=sflag, size = 0x4, scoped, tag = 'scoped memory for tpu_custom_call.1']
    #allocation7 [shape = 'u8[8192]{0}', space=vmem, size = 0x2000, scoped, tag = 'input window, operand 3, single buffered']
    #allocation8 [shape = 'u8[192512]{0}', space=vmem, size = 0x2f000, scoped, tag = 'input window, operand 4, single buffered']
    #allocation9 [shape = 's32[1]{0}', space=sflag, size = 0x4, scoped, tag = 'scoped memory for tpu_custom_call.1']
    #allocation10 [shape = 'u8[4096]{0}', space=vmem, size = 0x1000, scoped, tag = 'output window, operand 0, single buffered']
    %11 = vsyncpa [#allocation3], 0
    %12 = vsyncpa [#allocation6], 0
    %13 = vsyncpa [#allocation9], 0
    %14 = vsyncpa [#allocation4], 0
    // Predicated region
    $region2: #{tpu_custom_call.1} parent=1 // pred_check
      _
    $region3: #{tpu_custom_call.1} parent=1 // pred_check_branch
      %16 = sbr.rel (0) target = $region5
    $region4: #{tpu_custom_call.1} parent=1 // pred_region
      %18 = vsyncadd [#allocation3], 0
      %s20 = sshll.u32 %s0, 4
      %s21 = int_to_ptr.hbm [resolvable:$true] %s20
      %s22 = sshll.u32 [#allocation2], 4
      %s23 = int_to_ptr.vmem [resolvable:$true] %s22
      %25 = dma.hbm_to_vmem [thread:$0]  %s21, 128, %s23, [#allocation3]
    $region5: #{tpu_custom_call.1} parent=1 // pred_fallthru
      _
    // Predicated region
    $region6: #{tpu_custom_call.1} parent=1 // pred_check
      _
    $region7: #{tpu_custom_call.1} parent=1 // pred_check_branch
      %27 = sbr.rel (0) target = $region9
    $region8: #{tpu_custom_call.1} parent=1 // pred_region
      %29 = vsyncadd [#allocation6], 0
      %s31 = sshll.u32 %s1, 4
      %s32 = int_to_ptr.hbm [resolvable:$true] %s31
      %s33 = sshll.u32 [#allocation5], 4
      %s34 = int_to_ptr.vmem [resolvable:$true] %s33
      %36 = dma.hbm_to_vmem [thread:$0]  %s32, 128, %s34, [#allocation6]
    $region9: #{tpu_custom_call.1} parent=1 // pred_fallthru
      _
    // Predicated region
    $region10: #{tpu_custom_call.1} parent=1 // pred_check
      _
    $region11: #{tpu_custom_call.1} parent=1 // pred_check_branch
      %38 = sbr.rel (0) target = $region13
    $region12: #{tpu_custom_call.1} parent=1 // pred_region
      _
    $region13: #{tpu_custom_call.1} parent=1 // pred_fallthru
      _
    // Predicated region
    $region14: #{tpu_custom_call.1} parent=1 // pred_check
      _
    $region15: #{tpu_custom_call.1} parent=1 // pred_check_branch
      %40 = sbr.rel (0) target = $region17
    $region16: #{tpu_custom_call.1} parent=1 // pred_region
      %42 = vsyncadd [#allocation6], 0
      %s43 = sshll.u32 %s3, 4
      %s44 = int_to_ptr.hbm [resolvable:$true] %s43
      %s45 = sshll.u32 [#allocation7], 4
      %s46 = int_to_ptr.vmem [resolvable:$true] %s45
      %51 = dma.hbm_to_vmem [thread:$0]  %s44, 256, %s46, [#allocation6], 128, 128, 8
    $region17: #{tpu_custom_call.1} parent=1 // pred_fallthru
      _
    // Predicated region
    $region18: #{tpu_custom_call.1} parent=1 // pred_check
      _
    $region19: #{tpu_custom_call.1} parent=1 // pred_check_branch
      %53 = sbr.rel (0) target = $region21
    $region20: #{tpu_custom_call.1} parent=1 // pred_region
      %55 = vsyncadd [#allocation9], 0
      %s56 = sshll.u32 %s4, 4
      %s57 = int_to_ptr.hbm [resolvable:$true] %s56
      %s58 = sshll.u32 [#allocation8], 4
      %s59 = int_to_ptr.vmem [resolvable:$true] %s58
      %64 = dma.hbm_to_vmem [thread:$0]  %s57, 6016, %s59, [#allocation9], 64, 64, 4
    $region21: #{tpu_custom_call.1} parent=1 // pred_fallthru
      _
    // Predicated region
    $region22: #{tpu_custom_call.1} parent=1 // pred_check
      _
    $region23: #{tpu_custom_call.1} parent=1 // pred_check_branch
      %66 = sbr.rel (0) target = $region25
    $region24: #{tpu_custom_call.1} parent=1 // pred_region
      _
    $region25: #{tpu_custom_call.1} parent=1 // pred_fallthru
      _
    // Predicated region
    $region26: #{tpu_custom_call.1} parent=1 // pred_check
      _
    $region27: #{tpu_custom_call.1} parent=1 // pred_check_branch
      %68 = sbr.rel (0) target = $region29
    $region28: #{tpu_custom_call.1} parent=1 // pred_region
      %70 = dma.done [#allocation3], 128
    $region29: #{tpu_custom_call.1} parent=1 // pred_fallthru
      _
    // Predicated region
    $region30: #{tpu_custom_call.1} parent=1 // pred_check
      _
    $region31: #{tpu_custom_call.1} parent=1 // pred_check_branch
      %72 = sbr.rel (0) target = $region33
    $region32: #{tpu_custom_call.1} parent=1 // pred_region
      %74 = dma.done [#allocation6], 128
    $region33: #{tpu_custom_call.1} parent=1 // pred_fallthru
      _
    // Predicated region
    $region34: #{tpu_custom_call.1} parent=1 // pred_check
      _
    $region35: #{tpu_custom_call.1} parent=1 // pred_check_branch
      %76 = sbr.rel (0) target = $region37
    $region36: #{tpu_custom_call.1} parent=1 // pred_region
      %78 = dma.done [#allocation6], 256
    $region37: #{tpu_custom_call.1} parent=1 // pred_fallthru
      _
    // Predicated region
    $region38: #{tpu_custom_call.1} parent=1 // pred_check
      _
    $region39: #{tpu_custom_call.1} parent=1 // pred_check_branch
      %80 = sbr.rel (0) target = $region41
    $region40: #{tpu_custom_call.1} parent=1 // pred_region
      %82 = dma.done [#allocation9], 6016
    $region41: #{tpu_custom_call.1} parent=1 // pred_fallthru
      _
    %v84 = vld [vmem:[%s2] sm:$0xff]
    %v85 = vld [vmem:[#allocation2] sm:$0xff]
    %v86 = vld [vmem:[#allocation5] sm:$0xff]
    %v87 = vld [vmem:[#allocation7] sm:$0xff]
    %v88 = vld [vmem:[#allocation7 + $0x8] sm:$0xff]
    %v89 = vpack.c.bf16 %v86, %v85
    %v90 = vld [vmem:[%s5] ss:$8 sm:$0x3]
    %v92 = vperm.slane %v90, 0
    %v93 = vperm.slane %v90, 1
    %v98 = vunpack.c.l.b16 %v87
    %v99 = vunpack.c.h.b16 %v87
    %v100 = vunpack.c.l.b16 %v88
    %v101 = vunpack.c.h.b16 %v88
    %v102 = vpack.c.b16 %v100, %v98
    %v103 = vpack.c.b16 %v101, %v99
    %vm106 = vcmask 130048
    %v108 = vsel %vm106, %v89, 0
    %110 = vmatpush.bf16.msra.mxu0 0
    %111 = vmatpush.bf16.msra.mxu0 0
    %112 = vmatpush.bf16.msra.mxu0 0
    %113 = vmatpush.bf16.msra.mxu0 0
    %114 = vmatpush.bf16.msra.mxu0 0
    %115 = vmatpush.bf16.msra.mxu0 0
    %116 = vmatpush.bf16.msra.mxu0 0
    %117 = vmatpush.bf16.msra.mxu0 %v102
    %118 = vmatmul.bf16.gmra.mxu0 %v108
    %v119 = vpop.f32.mrf.mxu0
    %v120 = vadd.f32 %v92, %v119
    %v121 = vpop.f32.mrf.mxu0
    %v122 = vadd.f32 %v92, %v121
    %123 = vdwg.mxu0
    %124 = vmatpush.bf16.msra.mxu0 0
    %125 = vmatpush.bf16.msra.mxu0 0
    %126 = vmatpush.bf16.msra.mxu0 0
    %127 = vmatpush.bf16.msra.mxu0 0
    %128 = vmatpush.bf16.msra.mxu0 0
    %129 = vmatpush.bf16.msra.mxu0 0
    %130 = vmatpush.bf16.msra.mxu0 0
    %131 = vmatpush.bf16.msra.mxu0 %v103
    %132 = vmatmul.bf16.gmra.mxu0 %v108
    %v133 = vpop.f32.mrf.mxu0
    %v134 = vadd.f32 %v93, %v133
    %v135 = vpop.f32.mrf.mxu0
    %v136 = vadd.f32 %v93, %v135
    %137 = vdwg.mxu0
    %v138 = vmax.f32 %v120, 0.0
    %v139 = vmax.f32 %v134, 0.0
    %v140 = vmax.f32 %v122, 0.0
    %v141 = vmax.f32 %v136, 0.0
    %v142 = vld [vmem:[#allocation8] sm:$0xf]
    %v143 = vld [vmem:[#allocation8 + $0x4] sm:$0xf]
    %v144 = vld [vmem:[#allocation8 + $0x8] sm:$0xf]
    %v145 = vld [vmem:[#allocation8 + $0xc] sm:$0xf]
    %v146 = vld [vmem:[#allocation8 + $0x10] sm:$0xf]
    %v147 = vld [vmem:[#allocation8 + $0x14] sm:$0xf]
    %v148 = vld [vmem:[#allocation8 + $0x18] sm:$0xf]
    %v149 = vld [vmem:[#allocation8 + $0x1c] sm:$0xf]
    %v150 = vld [vmem:[#allocation8 + $0x20] sm:$0xf]
    %v151 = vld [vmem:[#allocation8 + $0x24] sm:$0xf]
    %v152 = vld [vmem:[#allocation8 + $0x28] sm:$0xf]
    %v153 = vld [vmem:[#allocation8 + $0x2c] sm:$0xf]
    %v154 = vld [vmem:[#allocation8 + $0x30] sm:$0xf]
    %v155 = vld [vmem:[#allocation8 + $0x34] sm:$0xf]
    %v156 = vld [vmem:[#allocation8 + $0x38] sm:$0xf]
    %v157 = vld [vmem:[#allocation8 + $0x3c] sm:$0xf]
    %v158 = vld [vmem:[#allocation8 + $0x40] sm:$0xf]
    %v159 = vld [vmem:[#allocation8 + $0x44] sm:$0xf]
    %v160 = vld [vmem:[#allocation8 + $0x48] sm:$0xf]
    %v161 = vld [vmem:[#allocation8 + $0x4c] sm:$0xf]
    %v162 = vld [vmem:[#allocation8 + $0x50] sm:$0xf]
    %v163 = vld [vmem:[#allocation8 + $0x54] sm:$0xf]
    %v164 = vld [vmem:[#allocation8 + $0x58] sm:$0xf]
    %v165 = vld [vmem:[#allocation8 + $0x5c] sm:$0xf]
    %v166 = vld [vmem:[#allocation8 + $0x60] sm:$0xf]
    %v167 = vld [vmem:[#allocation8 + $0x64] sm:$0xf]
    %v168 = vld [vmem:[#allocation8 + $0x68] sm:$0xf]
    %v169 = vld [vmem:[#allocation8 + $0x6c] sm:$0xf]
    %v170 = vld [vmem:[#allocation8 + $0x70] sm:$0xf]
    %v171 = vld [vmem:[#allocation8 + $0x74] sm:$0xf]
    %v172 = vld [vmem:[#allocation8 + $0x78] sm:$0xf]
    %v173 = vld [vmem:[#allocation8 + $0x7c] sm:$0xf]
    %v174 = vpack.c.bf16 %v140, %v138
    %v175 = vpack.c.bf16 %v141, %v139
    %v176 = vld [vmem:[%s5 + $0x1] ss:$0 sm:$0xff]
    %v209 = vunpack.c.l.b16 %v142
    %v210 = vunpack.c.l.b16 %v143
    %v211 = vunpack.c.l.b16 %v144
    %v212 = vunpack.c.l.b16 %v145
    %v213 = vunpack.c.l.b16 %v146
    %v214 = vunpack.c.l.b16 %v147
    %v215 = vunpack.c.l.b16 %v148
    %v216 = vunpack.c.l.b16 %v149
    %v217 = vunpack.c.l.b16 %v150
    %v218 = vunpack.c.l.b16 %v151
    %v219 = vunpack.c.l.b16 %v152
    %v220 = vunpack.c.l.b16 %v153
    %v221 = vunpack.c.l.b16 %v154
    %v222 = vunpack.c.l.b16 %v155
    %v223 = vunpack.c.l.b16 %v156
    %v224 = vunpack.c.l.b16 %v157
    %v225 = vunpack.c.l.b16 %v158
    %v226 = vunpack.c.l.b16 %v159
    %v227 = vunpack.c.l.b16 %v160
    %v228 = vunpack.c.l.b16 %v161
    %v229 = vunpack.c.l.b16 %v162
    %v230 = vunpack.c.l.b16 %v163
    %v231 = vunpack.c.l.b16 %v164
    %v232 = vunpack.c.l.b16 %v165
    %v233 = vunpack.c.l.b16 %v166
    %v234 = vunpack.c.l.b16 %v167
    %v235 = vunpack.c.l.b16 %v168
    %v236 = vunpack.c.l.b16 %v169
    %v237 = vunpack.c.l.b16 %v170
    %v238 = vunpack.c.l.b16 %v171
    %v239 = vunpack.c.l.b16 %v172
    %v240 = vunpack.c.l.b16 %v173
    %v241 = vpack.c.b16 %v210, %v209
    %v242 = vpack.c.b16 %v212, %v211
    %v243 = vpack.c.b16 %v214, %v213
    %v244 = vpack.c.b16 %v216, %v215
    %v245 = vpack.c.b16 %v218, %v217
    %v246 = vpack.c.b16 %v220, %v219
    %v247 = vpack.c.b16 %v222, %v221
    %v248 = vpack.c.b16 %v224, %v223
    %v249 = vpack.c.b16 %v226, %v225
    %v250 = vpack.c.b16 %v228, %v227
    %v251 = vpack.c.b16 %v230, %v229
    %v252 = vpack.c.b16 %v232, %v231
    %v253 = vpack.c.b16 %v234, %v233
    %v254 = vpack.c.b16 %v236, %v235
    %v255 = vpack.c.b16 %v238, %v237
    %v256 = vpack.c.b16 %v240, %v239
    %273 = vmatpush.bf16.msra.mxu0 %v248
    %274 = vmatpush.bf16.msra.mxu0 %v247
    %275 = vmatpush.bf16.msra.mxu0 %v246
    %276 = vmatpush.bf16.msra.mxu0 %v245
    %277 = vmatpush.bf16.msra.mxu0 %v244
    %278 = vmatpush.bf16.msra.mxu0 %v243
    %279 = vmatpush.bf16.msra.mxu0 %v242
    %280 = vmatpush.bf16.msra.mxu0 %v241
    %281 = vmatmul.bf16.gmra.mxu0 %v174
    %v282 = vpop.f32.mrf.mxu0
    %v283 = vadd.f32 %v176, %v282
    %v284 = vpop.f32.mrf.mxu0
    %v285 = vadd.f32 %v176, %v284
    %286 = vdwg.mxu0
    %287 = vmatpush.bf16.msra.mxu0 %v256
    %288 = vmatpush.bf16.msra.mxu0 %v255
    %289 = vmatpush.bf16.msra.mxu0 %v254
    %290 = vmatpush.bf16.msra.mxu0 %v253
    %291 = vmatpush.bf16.msra.mxu0 %v252
    %292 = vmatpush.bf16.msra.mxu0 %v251
    %293 = vmatpush.bf16.msra.mxu0 %v250
    %294 = vmatpush.bf16.msra.mxu0 %v249
    %295 = vmatmul.bf16.gmra.mxu0 %v175
    %v296 = vpop.f32.mrf.mxu0
    %v297 = vadd.f32 %v283, %v296
    %v298 = vpop.f32.mrf.mxu0
    %v299 = vadd.f32 %v285, %v298
    %300 = vdwg.mxu0
    %v301 = vmax.f32 %v297, 0.0
    %v302 = vmax.f32 %v299, 0.0
    %v303 = vld [vmem:[#allocation8 + $0x80] sm:$0xf]
    %v304 = vld [vmem:[#allocation8 + $0x84] sm:$0xf]
    %v305 = vld [vmem:[#allocation8 + $0x88] sm:$0xf]
    %v306 = vld [vmem:[#allocation8 + $0x8c] sm:$0xf]
    %v307 = vld [vmem:[#allocation8 + $0x90] sm:$0xf]
    %v308 = vld [vmem:[#allocation8 + $0x94] sm:$0xf]
    %v309 = vld [vmem:[#allocation8 + $0x98] sm:$0xf]
    %v310 = vld [vmem:[#allocation8 + $0x9c] sm:$0xf]
    %v311 = vpack.c.bf16 %v302, %v301
    %v312 = vld [vmem:[%s5 + $0x2] ss:$0 sm:$0xff]
    %v321 = vunpack.c.l.b16 %v303
    %v322 = vunpack.c.l.b16 %v304
    %v323 = vunpack.c.l.b16 %v305
    %v324 = vunpack.c.l.b16 %v306
    %v325 = vunpack.c.l.b16 %v307
    %v326 = vunpack.c.l.b16 %v308
    %v327 = vunpack.c.l.b16 %v309
    %v328 = vunpack.c.l.b16 %v310
    %v329 = vpack.c.b16 %v322, %v321
    %v330 = vpack.c.b16 %v324, %v323
    %v331 = vpack.c.b16 %v326, %v325
    %v332 = vpack.c.b16 %v328, %v327
    %vm337 = vcmask 523264
    %v339 = vsel %vm337, %v311, 0
    %341 = vmatpush.bf16.msra.mxu0 0
    %342 = vmatpush.bf16.msra.mxu0 0
    %343 = vmatpush.bf16.msra.mxu0 0
    %344 = vmatpush.bf16.msra.mxu0 0
    %345 = vmatpush.bf16.msra.mxu0 %v332
    %346 = vmatpush.bf16.msra.mxu0 %v331
    %347 = vmatpush.bf16.msra.mxu0 %v330
    %348 = vmatpush.bf16.msra.mxu0 %v329
    %349 = vmatmul.bf16.gmra.mxu0 %v339
    %v350 = vpop.f32.mrf.mxu0
    %v351 = vadd.f32 %v312, %v350
    %v352 = vpop.f32.mrf.mxu0
    %v353 = vadd.f32 %v312, %v352
    %354 = vdwg.mxu0
    %v355 = vld [vmem:[#allocation8 + $0xa0] sm:$0xf]
    %v356 = vpack.c.bf16 %v351, %v351
    %v357 = vld [vmem:[#allocation8 + $0xa8] sm:$0x3]
    %v358 = vpack.c.bf16 %v84, %v84
    %vm359 = vcmask 31744
    %v361 = vsel %vm359, %v358, 0
    %vm363 = vcmask 1041408
    %v365 = vsel %vm363, %v357, 0
    %367 = vmatpush.bf16.msra.mxu0 0
    %368 = vmatpush.bf16.msra.mxu0 0
    %369 = vmatpush.bf16.msra.mxu0 0
    %370 = vmatpush.bf16.msra.mxu0 0
    %371 = vmatpush.bf16.msra.mxu0 0
    %372 = vmatpush.bf16.msra.mxu0 0
    %373 = vmatpush.bf16.msra.mxu0 0
    %374 = vmatpush.bf16.msra.mxu0 %v365
    %375 = vmatmul.bf16.gmra.mxu0 %v361
    %v376 = vpop.f32.mrf.mxu0
    %v377 = vadd.f32 0.0, %v376
    %v378 = vpop.f32.mrf.mxu0
    %379 = vdwg.mxu0
    %vm380 = vcmask 64512
    %v382 = vsel %vm380, %v356, 0
    %vm384 = vcmask 1043456
    %v386 = vsel %vm384, %v355, 0
    %388 = vmatpush.bf16.msra.mxu0 0
    %389 = vmatpush.bf16.msra.mxu0 0
    %390 = vmatpush.bf16.msra.mxu0 0
    %391 = vmatpush.bf16.msra.mxu0 0
    %392 = vmatpush.bf16.msra.mxu0 0
    %393 = vmatpush.bf16.msra.mxu0 0
    %394 = vmatpush.bf16.msra.mxu0 0
    %395 = vmatpush.bf16.msra.mxu0 %v386
    %396 = vmatmul.bf16.gmra.mxu0 %v382
    %v397 = vpop.f32.mrf.mxu0
    %v398 = vadd.f32 %v377, %v397
    %v399 = vpop.f32.mrf.mxu0
    %400 = vdwg.mxu0
    %v401 = vld [vmem:[#allocation8 + $0xb0] sm:$0xf]
    %v402 = vpack.c.bf16 %v353, %v353
    %v404 = vsel %vm380, %v402, 0
    %v407 = vsel %vm384, %v401, 0
    %409 = vmatpush.bf16.msra.mxu0 0
    %410 = vmatpush.bf16.msra.mxu0 0
    %411 = vmatpush.bf16.msra.mxu0 0
    %412 = vmatpush.bf16.msra.mxu0 0
    %413 = vmatpush.bf16.msra.mxu0 0
    %414 = vmatpush.bf16.msra.mxu0 0
    %415 = vmatpush.bf16.msra.mxu0 0
    %416 = vmatpush.bf16.msra.mxu0 %v407
    %417 = vmatmul.bf16.gmra.mxu0 %v404
    %v418 = vpop.f32.mrf.mxu0
    %v419 = vadd.f32 0.0, %v418
    %v420 = vpop.f32.mrf.mxu0
    %421 = vdwg.mxu0
    %v422 = vadd.f32 %v398, %v419
    %v423 = vld [vmem:[%s5 + $0x3] ss:$0 sm:$0xff]
    %v424 = vadd.f32 %v422, %v423
    %v425 = vmax.f32 %v424, 0.0
    %v426 = vld [vmem:[#allocation8 + $0xb8] sm:$0xf]
    %v427 = vld [vmem:[#allocation8 + $0xbc] sm:$0xf]
    %v428 = vld [vmem:[#allocation8 + $0xc0] sm:$0xf]
    %v429 = vld [vmem:[#allocation8 + $0xc4] sm:$0xf]
    %v430 = vld [vmem:[#allocation8 + $0xc8] sm:$0xf]
    %v431 = vld [vmem:[#allocation8 + $0xcc] sm:$0xf]
    %v432 = vld [vmem:[#allocation8 + $0xd0] sm:$0xf]
    %v433 = vld [vmem:[#allocation8 + $0xd4] sm:$0xf]
    %v434 = vld [vmem:[#allocation8 + $0xd8] sm:$0xf]
    %v435 = vld [vmem:[#allocation8 + $0xdc] sm:$0xf]
    %v436 = vld [vmem:[#allocation8 + $0xe0] sm:$0xf]
    %v437 = vld [vmem:[#allocation8 + $0xe4] sm:$0xf]
    %v438 = vld [vmem:[#allocation8 + $0xe8] sm:$0xf]
    %v439 = vld [vmem:[#allocation8 + $0xec] sm:$0xf]
    %v440 = vld [vmem:[#allocation8 + $0xf0] sm:$0xf]
    %v441 = vld [vmem:[#allocation8 + $0xf4] sm:$0xf]
    %v442 = vpack.c.bf16 %v425, %v425
    %v443 = vld [vmem:[%s5 + $0x4] ss:$0 sm:$0xff]
    %v460 = vunpack.c.l.b16 %v426
    %v461 = vunpack.c.l.b16 %v427
    %v462 = vunpack.c.l.b16 %v428
    %v463 = vunpack.c.l.b16 %v429
    %v464 = vunpack.c.l.b16 %v430
    %v465 = vunpack.c.l.b16 %v431
    %v466 = vunpack.c.l.b16 %v432
    %v467 = vunpack.c.l.b16 %v433
    %v468 = vunpack.c.l.b16 %v434
    %v469 = vunpack.c.l.b16 %v435
    %v470 = vunpack.c.l.b16 %v436
    %v471 = vunpack.c.l.b16 %v437
    %v472 = vunpack.c.l.b16 %v438
    %v473 = vunpack.c.l.b16 %v439
    %v474 = vunpack.c.l.b16 %v440
    %v475 = vunpack.c.l.b16 %v441
    %v476 = vpack.c.b16 %v461, %v460
    %v477 = vpack.c.b16 %v463, %v462
    %v478 = vpack.c.b16 %v465, %v464
    %v479 = vpack.c.b16 %v467, %v466
    %v480 = vpack.c.b16 %v469, %v468
    %v481 = vpack.c.b16 %v471, %v470
    %v482 = vpack.c.b16 %v473, %v472
    %v483 = vpack.c.b16 %v475, %v474
    %492 = vmatpush.bf16.msra.mxu0 %v483
    %493 = vmatpush.bf16.msra.mxu0 %v482
    %494 = vmatpush.bf16.msra.mxu0 %v481
    %495 = vmatpush.bf16.msra.mxu0 %v480
    %496 = vmatpush.bf16.msra.mxu0 %v479
    %497 = vmatpush.bf16.msra.mxu0 %v478
    %498 = vmatpush.bf16.msra.mxu0 %v477
    %499 = vmatpush.bf16.msra.mxu0 %v476
    %500 = vmatmul.bf16.gmra.mxu0 %v442
    %v501 = vpop.f32.mrf.mxu0
    %v502 = vadd.f32 %v443, %v501
    %v503 = vpop.f32.mrf.mxu0
    %504 = vdwg.mxu0
    %v505 = vmax.f32 %v502, 0.0
    %v506 = vld [vmem:[#allocation8 + $0xf8] sm:$0xf]
    %v507 = vld [vmem:[#allocation8 + $0xfc] sm:$0xf]
    %v508 = vld [vmem:[#allocation8 + $0x100] sm:$0xf]
    %v509 = vld [vmem:[#allocation8 + $0x104] sm:$0xf]
    %v510 = vld [vmem:[#allocation8 + $0x108] sm:$0xf]
    %v511 = vld [vmem:[#allocation8 + $0x10c] sm:$0xf]
    %v512 = vld [vmem:[#allocation8 + $0x110] sm:$0xf]
    %v513 = vld [vmem:[#allocation8 + $0x114] sm:$0xf]
    %v514 = vld [vmem:[#allocation8 + $0x118] sm:$0xf]
    %v515 = vld [vmem:[#allocation8 + $0x11c] sm:$0xf]
    %v516 = vld [vmem:[#allocation8 + $0x120] sm:$0xf]
    %v517 = vld [vmem:[#allocation8 + $0x124] sm:$0xf]
    %v518 = vld [vmem:[#allocation8 + $0x128] sm:$0xf]
    %v519 = vld [vmem:[#allocation8 + $0x12c] sm:$0xf]
    %v520 = vld [vmem:[#allocation8 + $0x130] sm:$0xf]
    %v521 = vld [vmem:[#allocation8 + $0x134] sm:$0xf]
    %v522 = vpack.c.bf16 %v505, %v505
    %v523 = vld [vmem:[%s5 + $0x5] ss:$0 sm:$0xff]
    %v540 = vunpack.c.l.b16 %v506
    %v541 = vunpack.c.l.b16 %v507
    %v542 = vunpack.c.l.b16 %v508
    %v543 = vunpack.c.l.b16 %v509
    %v544 = vunpack.c.l.b16 %v510
    %v545 = vunpack.c.l.b16 %v511
    %v546 = vunpack.c.l.b16 %v512
    %v547 = vunpack.c.l.b16 %v513
    %v548 = vunpack.c.l.b16 %v514
    %v549 = vunpack.c.l.b16 %v515
    %v550 = vunpack.c.l.b16 %v516
    %v551 = vunpack.c.l.b16 %v517
    %v552 = vunpack.c.l.b16 %v518
    %v553 = vunpack.c.l.b16 %v519
    %v554 = vunpack.c.l.b16 %v520
    %v555 = vunpack.c.l.b16 %v521
    %v556 = vpack.c.b16 %v541, %v540
    %v557 = vpack.c.b16 %v543, %v542
    %v558 = vpack.c.b16 %v545, %v544
    %v559 = vpack.c.b16 %v547, %v546
    %v560 = vpack.c.b16 %v549, %v548
    %v561 = vpack.c.b16 %v551, %v550
    %v562 = vpack.c.b16 %v553, %v552
    %v563 = vpack.c.b16 %v555, %v554
    %572 = vmatpush.bf16.msra.mxu0 %v563
    %573 = vmatpush.bf16.msra.mxu0 %v562
    %574 = vmatpush.bf16.msra.mxu0 %v561
    %575 = vmatpush.bf16.msra.mxu0 %v560
    %576 = vmatpush.bf16.msra.mxu0 %v559
    %577 = vmatpush.bf16.msra.mxu0 %v558
    %578 = vmatpush.bf16.msra.mxu0 %v557
    %579 = vmatpush.bf16.msra.mxu0 %v556
    %580 = vmatmul.bf16.gmra.mxu0 %v522
    %v581 = vpop.f32.mrf.mxu0
    %v582 = vadd.f32 %v523, %v581
    %v583 = vpop.f32.mrf.mxu0
    %584 = vdwg.mxu0
    %v585 = vmax.f32 %v582, 0.0
    %v586 = vld [vmem:[#allocation8 + $0x138] sm:$0xf]
    %v587 = vld [vmem:[#allocation8 + $0x13c] sm:$0xf]
    %v588 = vld [vmem:[#allocation8 + $0x140] sm:$0xf]
    %v589 = vld [vmem:[#allocation8 + $0x144] sm:$0xf]
    %v590 = vld [vmem:[#allocation8 + $0x148] sm:$0xf]
    %v591 = vld [vmem:[#allocation8 + $0x14c] sm:$0xf]
    %v592 = vld [vmem:[#allocation8 + $0x150] sm:$0xf]
    %v593 = vld [vmem:[#allocation8 + $0x154] sm:$0xf]
    %v594 = vld [vmem:[#allocation8 + $0x158] sm:$0xf]
    %v595 = vld [vmem:[#allocation8 + $0x15c] sm:$0xf]
    %v596 = vld [vmem:[#allocation8 + $0x160] sm:$0xf]
    %v597 = vld [vmem:[#allocation8 + $0x164] sm:$0xf]
    %v598 = vld [vmem:[#allocation8 + $0x168] sm:$0xf]
    %v599 = vld [vmem:[#allocation8 + $0x16c] sm:$0xf]
    %v600 = vld [vmem:[#allocation8 + $0x170] sm:$0xf]
    %v601 = vld [vmem:[#allocation8 + $0x174] sm:$0xf]
    %v602 = vpack.c.bf16 %v585, %v585
    %v603 = vld [vmem:[%s5 + $0x6] ss:$0 sm:$0xff]
    %v620 = vunpack.c.l.b16 %v586
    %v621 = vunpack.c.l.b16 %v587
    %v622 = vunpack.c.l.b16 %v588
    %v623 = vunpack.c.l.b16 %v589
    %v624 = vunpack.c.l.b16 %v590
    %v625 = vunpack.c.l.b16 %v591
    %v626 = vunpack.c.l.b16 %v592
    %v627 = vunpack.c.l.b16 %v593
    %v628 = vunpack.c.l.b16 %v594
    %v629 = vunpack.c.l.b16 %v595
    %v630 = vunpack.c.l.b16 %v596
    %v631 = vunpack.c.l.b16 %v597
    %v632 = vunpack.c.l.b16 %v598
    %v633 = vunpack.c.l.b16 %v599
    %v634 = vunpack.c.l.b16 %v600
    %v635 = vunpack.c.l.b16 %v601
    %v636 = vpack.c.b16 %v621, %v620
    %v637 = vpack.c.b16 %v623, %v622
    %v638 = vpack.c.b16 %v625, %v624
    %v639 = vpack.c.b16 %v627, %v626
    %v640 = vpack.c.b16 %v629, %v628
    %v641 = vpack.c.b16 %v631, %v630
    %v642 = vpack.c.b16 %v633, %v632
    %v643 = vpack.c.b16 %v635, %v634
    %652 = vmatpush.bf16.msra.mxu0 %v643
    %653 = vmatpush.bf16.msra.mxu0 %v642
    %654 = vmatpush.bf16.msra.mxu0 %v641
    %655 = vmatpush.bf16.msra.mxu0 %v640
    %656 = vmatpush.bf16.msra.mxu0 %v639
    %657 = vmatpush.bf16.msra.mxu0 %v638
    %658 = vmatpush.bf16.msra.mxu0 %v637
    %659 = vmatpush.bf16.msra.mxu0 %v636
    %660 = vmatmul.bf16.gmra.mxu0 %v602
    %v661 = vpop.f32.mrf.mxu0
    %v662 = vadd.f32 %v603, %v661
    %v663 = vpop.f32.mrf.mxu0
    %664 = vdwg.mxu0
    %v665 = vsub.f32 %v662, %v353
    %667 = vrot.lane.b32.xlu0 %v84, 64
    %v668 = vpop.permute.xlu0 %667
    %v670 = vsub.f32 %v662, %v668
    %v671 = vmul.f32 %v665, %v665
    %v672 = vsel %vm380, %v671, 0.0
    %673 = vadd.xlane.f32.xlu0 %v672
    %v674 = vpop.xlane.xlu0 %673
    %v675 = vrot.slane %v674, 4
    %v676 = vadd.f32 %v674, %v675
    %v677 = vrot.slane %v676, 2
    %v678 = vadd.f32 %v676, %v677
    %v679 = vrot.slane %v678, 1
    %v680 = vadd.f32 %v678, %v679
    %v681 = vmul.f32 %v670, %v670
    %683 = vrot.lane.b32.xlu0 %v681, 64
    %v684 = vpop.permute.xlu0 %683
    %v686 = vsel %vm359, %v684, 0.0
    %687 = vadd.xlane.f32.xlu0 %v686
    %v688 = vpop.xlane.xlu0 %687
    %v689 = vrot.slane %v688, 4
    %v690 = vadd.f32 %v688, %v689
    %v691 = vrot.slane %v690, 2
    %v692 = vadd.f32 %v690, %v691
    %v693 = vrot.slane %v692, 1
    %v694 = vadd.f32 %v692, %v693
    %v695 = vlaneseq
    %v696 = vand.u32 %v695, 127
    %vm697 = vcmp.eq.s32.totalorder %v696, 0
    %v698 = vsel %vm697, %v680, 0.0
    %vm699 = vcmp.eq.s32.totalorder %v696, 1
    %v700 = vsel %vm699, %v694, 0.0
    %v701 = vadd.f32 %v698, %v700
    %702 = vst [vmem:[#allocation10] sm:$0xff] %v701
    // Predicated region
    $region42: #{tpu_custom_call.1} parent=1 // pred_check
      _
    $region43: #{tpu_custom_call.1} parent=1 // pred_check_branch
      %704 = sbr.rel (0) target = $region45
    $region44: #{tpu_custom_call.1} parent=1 // pred_region
      %706 = vsyncadd [#allocation4], 0
      %s708 = sshll.u32 [#allocation10], 4
      %s709 = int_to_ptr.vmem [resolvable:$true] %s708
      %s710 = sshll.u32 %s6, 4
      %s711 = int_to_ptr.hbm [resolvable:$true] %s710
      %713 = dma.vmem_to_hbm [thread:$0]  %s709, 128, %s711, [#allocation4]
    $region45: #{tpu_custom_call.1} parent=1 // pred_fallthru
      _
    // Predicated region
    $region46: #{tpu_custom_call.1} parent=1 // pred_check
      _
    $region47: #{tpu_custom_call.1} parent=1 // pred_check_branch
      %715 = sbr.rel (0) target = $region49
    $region48: #{tpu_custom_call.1} parent=1 // pred_region
      %717 = dma.done [#allocation4], 128
    $region49: #{tpu_custom_call.1} parent=1 // pred_fallthru
      _
    %718 = vsyncpa [#allocation3], 1
    %719 = vsyncpa [#allocation6], 1
    %720 = vsyncpa [#allocation9], 1
    %721 = vsyncpa [#allocation4], 1

</llo_original>
